<compile_context>
chip_gen: v7x
topology: tpu7x:2x2x1
jax: 0.10.0
libtpu: 0.0.40
codegen_flags: <defaults>
</compile_context>

<pallas_src>
import jax
import jax.numpy as jnp
from jax.experimental import pallas as pl
from jax.experimental.pallas import tpu as pltpu


def _round_up(n, m):
    return ((n + m - 1) // m) * m


def _mlp_kernel(x_ref, w1t_ref, b1_ref, w2t_ref, b2_ref, o_ref):
    # x_ref  : [TB, 5]    compute dtype (streamed, double-buffered)
    # w1t_ref: [5, 1024]  compute dtype (VMEM-resident)
    # b1_ref : [1, 1024]  f32           (VMEM-resident)
    # w2t_ref: [1024, 4]  compute dtype (VMEM-resident)
    # b2_ref : [1, 4]     f32           (VMEM-resident)
    # o_ref  : [TB, 4]    f32
    h = jnp.dot(x_ref[...], w1t_ref[...],
                preferred_element_type=jnp.float32)          # [TB, 1024] fp32 acc on MXU
    h = jnp.maximum(h + b1_ref[...], 0.0)                    # fp32 bias + ReLU (v5e-safe VPU)
    o = jnp.dot(h.astype(w2t_ref.dtype), w2t_ref[...],       # bf16-packed pushes for layer 2
                preferred_element_type=jnp.float32)          # [TB, 4] fp32 acc
    o_ref[...] = (o + b2_ref[...]).astype(o_ref.dtype)


def dummy_mlp_forward(x, w1, b1, w2, b2, *, tb=2048, compute_dtype=jnp.bfloat16):
    """x: [B, 5] -> [B, 4].  Weights/biases in natural PyTorch layout:
    w1 [1024, 5], b1 [1024], w2 [4, 1024], b2 [4].

    compute_dtype controls the matmul input precision (bf16 default, fp32 available);
    accumulation, biases and the output are always fp32.
    """
    B, K = x.shape
    H = w1.shape[0]          # 1024
    O = w2.shape[0]          # 4

    # Clamp the tile to the (8-aligned) batch so small batches don't compute a full
    # 2048-wide tile of padding garbage.
    TB = int(min(int(tb), _round_up(B, 8)))
    n_blocks = pl.cdiv(B, TB)
    padded_B = n_blocks * TB

    xc = x.astype(compute_dtype)                              # [B, 5], natural layout
    if padded_B != B:
        xc = jnp.pad(xc, ((0, padded_B - B), (0, 0)))

    # Weight transposes are tiny (<=8 KiB) and batch-independent; done once here.
    w1t = w1.T.astype(compute_dtype)                          # [5, 1024]
    w2t = w2.T.astype(compute_dtype)                          # [1024, 4]
    b1r = b1.reshape(1, H).astype(jnp.float32)                # [1, 1024]
    b2r = b2.reshape(1, O).astype(jnp.float32)                # [1, 4]

    itemsize = jnp.dtype(compute_dtype).itemsize
    flops = 2 * padded_B * (K * H + H * O)
    bytes_accessed = (padded_B * K * itemsize                 # x streamed once
                      + padded_B * O * 4                      # out written once
                      + (K * H + H * O) * itemsize            # weights (VMEM-resident)
                      + (H + O) * 4)                          # biases

    # Per-step live VMEM is dominated by the fp32 h intermediate (+ its compute-dtype
    # copy for the second dot).  ~12 MiB at TB=2048, so the 32 MiB floor is safe on all
    # generations (incl. v7x's 64 MiB VMEM); scales up (capped) for larger user tiles.
    vmem_est = (TB * H * 4 + TB * H * itemsize
                + 2 * TB * K * itemsize + 2 * TB * O * 4
                + (K * H + H * O) * itemsize + (H + O) * 4)
    vmem_limit = int(min(96 * 1024 * 1024, max(32 * 1024 * 1024, 2 * vmem_est)))

    out = pl.pallas_call(
        _mlp_kernel,
        out_shape=jax.ShapeDtypeStruct((padded_B, O), jnp.float32),
        grid_spec=pltpu.PrefetchScalarGridSpec(
            num_scalar_prefetch=0,
            grid=(n_blocks,),
            in_specs=[
                pl.BlockSpec((TB, K), lambda i: (i, 0)),      # x tile  (streamed)
                pl.BlockSpec((K, H), lambda i: (0, 0)),       # W1^T    (resident)
                pl.BlockSpec((1, H), lambda i: (0, 0)),       # b1      (resident)
                pl.BlockSpec((H, O), lambda i: (0, 0)),       # W2^T    (resident)
                pl.BlockSpec((1, O), lambda i: (0, 0)),       # b2      (resident)
            ],
            out_specs=pl.BlockSpec((TB, O), lambda i: (i, 0)),
        ),
        compiler_params=pltpu.CompilerParams(
            dimension_semantics=("parallel",),                # shards batch over v7x's 2 TCs
            vmem_limit_bytes=vmem_limit,
        ),
        cost_estimate=pl.CostEstimate(
            flops=flops, transcendentals=0, bytes_accessed=bytes_accessed),
    )(xc, w1t, b1r, w2t, b2r)

    return out[:B]                                            # [B, 4]


def make_params():
    # Deterministic init matching DummyMLP.reset_parameters():
    #   net1.weight = 0.5 ([1024, 5]),  net1.bias = 1.5 ([1024])
    #   net2.weight = 1.0 ([4, 1024]),  net2.bias = 1.2 ([4])
    w1 = jnp.full((1024, 5), 0.5, dtype=jnp.float32)
    b1 = jnp.full((1024,), 1.5, dtype=jnp.float32)
    w2 = jnp.full((4, 1024), 1.0, dtype=jnp.float32)
    b2 = jnp.full((4,), 1.2, dtype=jnp.float32)
    return w1, b1, w2, b2


def _ref(x, w1, b1, w2, b2):
    return jnp.maximum(x @ w1.T + b1.reshape(1, -1), 0.0) @ w2.T + b2.reshape(1, -1)


if __name__ == "__main__":
    key = jax.random.PRNGKey(0)
    w1, b1, w2, b2 = make_params()

    # 1) fp32 path, reset_parameters() weights, single-tile grid -> tight check.
    x = jax.random.normal(key, (8, 5), dtype=jnp.float32)
    out = jax.block_until_ready(
        dummy_mlp_forward(x, w1, b1, w2, b2, compute_dtype=jnp.float32))
    assert out.shape == (8, 4)
    assert jnp.allclose(out, _ref(x, w1, b1, w2, b2), rtol=1e-5, atol=1e-5)

    # 2) fp32 path, random weights, multi-tile grid + ragged batch padding -> tight check.
    ks = jax.random.split(jax.random.PRNGKey(1), 5)
    xr = jax.random.normal(ks[0], (300, 5), dtype=jnp.float32)
    w1r = jax.random.normal(ks[1], (1024, 5), dtype=jnp.float32) * 0.3
    b1v = jax.random.normal(ks[2], (1024,), dtype=jnp.float32)
    w2r = jax.random.normal(ks[3], (4, 1024), dtype=jnp.float32) * 0.05
    b2v = jax.random.normal(ks[4], (4,), dtype=jnp.float32)
    out2 = jax.block_until_ready(
        dummy_mlp_forward(xr, w1r, b1v, w2r, b2v, tb=128, compute_dtype=jnp.float32))
    assert out2.shape == (300, 4)
    assert jnp.allclose(out2, _ref(xr, w1r, b1v, w2r, b2v), rtol=1e-4, atol=1e-4)

    # 3) bf16 fast path (the performance default).  Inputs are quantized to bf16 at the
    #    kernel boundary (accumulation is still fp32), so compare against a reference on
    #    bf16-quantized x with a correspondingly loose tolerance (h->bf16 before layer 2
    #    contributes ~2^-9 relative error amplified by the 1024-wide fan-in).
    x3 = jax.random.normal(jax.random.PRNGKey(2), (256, 5), dtype=jnp.float32)
    out3 = jax.block_until_ready(dummy_mlp_forward(x3, w1, b1, w2, b2))
    xq = x3.astype(jnp.bfloat16).astype(jnp.float32)
    assert out3.shape == (256, 4)
    assert jnp.allclose(out3, _ref(xq, w1, b1, w2, b2), rtol=1e-2, atol=0.5)

    print("KERNEL_OK")
</pallas_src>

<mosaic_0001>
module attributes {stable_mosaic.version = 11 : i64} {
  func.func @_mlp_kernel(%arg0: i32, %arg1: memref<8x5xf32, #tpu.memory_space<vmem>>, %arg2: memref<5x1024xf32, #tpu.memory_space<vmem>>, %arg3: memref<1x1024xf32, #tpu.memory_space<vmem>>, %arg4: memref<1024x4xf32, #tpu.memory_space<vmem>>, %arg5: memref<1x4xf32, #tpu.memory_space<vmem>>, %arg6: memref<8x4xf32, #tpu.memory_space<vmem>>) attributes {dimension_semantics = [#tpu.dimension_semantics<parallel>], iteration_bounds = array<i64: 1>, scalar_prefetch = 0 : i64, scratch_operands = 0 : i64, tpu.core_type = #tpu.core_type<tc>, window_params = [{transform_indices = @transform_0, window_bounds = array<i64: 8, 5>}, {pipeline_mode = #tpu.pipeline_mode<synchronous>, transform_indices = @transform_1, window_bounds = array<i64: 5, 1024>}, {pipeline_mode = #tpu.pipeline_mode<synchronous>, transform_indices = @transform_2, window_bounds = array<i64: 1, 1024>}, {pipeline_mode = #tpu.pipeline_mode<synchronous>, transform_indices = @transform_3, window_bounds = array<i64: 1024, 4>}, {pipeline_mode = #tpu.pipeline_mode<synchronous>, transform_indices = @transform_4, window_bounds = array<i64: 1, 4>}, {transform_indices = @transform_5, window_bounds = array<i64: 8, 4>}]} {
    %c0 = arith.constant 0 : index
    %c0_0 = arith.constant 0 : index
    %0 = vector.load %arg1[%c0, %c0_0] : memref<8x5xf32, #tpu.memory_space<vmem>>, vector<8x5xf32>
    %c0_1 = arith.constant 0 : index
    %c0_2 = arith.constant 0 : index
    %1 = vector.load %arg2[%c0_1, %c0_2] : memref<5x1024xf32, #tpu.memory_space<vmem>>, vector<5x1024xf32>
    %cst = arith.constant dense<0.000000e+00> : vector<8x1024xf32>
    %2 = tpu.matmul %0, %1, %cst {dimension_numbers = #tpu.dot_dimension_numbers<[1], [0], [0], [1], [0, 0, 1, 1], [], []>} : vector<8x5xf32>, vector<5x1024xf32>, vector<8x1024xf32> -> vector<8x1024xf32>
    %c0_3 = arith.constant 0 : index
    %c0_4 = arith.constant 0 : index
    %3 = vector.load %arg3[%c0_3, %c0_4] : memref<1x1024xf32, #tpu.memory_space<vmem>>, vector<1x1024xf32>
    %4 = vector.broadcast %3 : vector<1x1024xf32> to vector<8x1024xf32>
    %5 = arith.addf %2, %4 : vector<8x1024xf32>
    %cst_5 = arith.constant 0.000000e+00 : f32
    %6 = vector.broadcast %cst_5 : f32 to vector<8x1024xf32>
    %7 = arith.maximumf %5, %6 : vector<8x1024xf32>
    %c0_6 = arith.constant 0 : index
    %c0_7 = arith.constant 0 : index
    %8 = vector.load %arg4[%c0_6, %c0_7] : memref<1024x4xf32, #tpu.memory_space<vmem>>, vector<1024x4xf32>
    %cst_8 = arith.constant dense<0.000000e+00> : vector<8x4xf32>
    %9 = tpu.matmul %7, %8, %cst_8 {dimension_numbers = #tpu.dot_dimension_numbers<[1], [0], [0], [1], [0, 0, 1, 1], [], []>} : vector<8x1024xf32>, vector<1024x4xf32>, vector<8x4xf32> -> vector<8x4xf32>
    %c0_9 = arith.constant 0 : index
    %c0_10 = arith.constant 0 : index
    %10 = vector.load %arg5[%c0_9, %c0_10] : memref<1x4xf32, #tpu.memory_space<vmem>>, vector<1x4xf32>
    %11 = vector.broadcast %10 : vector<1x4xf32> to vector<8x4xf32>
    %12 = arith.addf %9, %11 : vector<8x4xf32>
    %c0_11 = arith.constant 0 : index
    %c0_12 = arith.constant 0 : index
    %13 = vector.load %arg6[%c0_11, %c0_12] : memref<8x4xf32, #tpu.memory_space<vmem>>, vector<8x4xf32>
    tpu.vector_store %arg6[%c0_11, %c0_12], %12 {strides = array<i32>} : memref<8x4xf32, #tpu.memory_space<vmem>>, vector<8x4xf32>,
    return
  }
  func.func @transform_0(%arg0: i32) -> (i32, i32) {
    %c0_i32 = arith.constant 0 : i32
    %c0_i32_0 = arith.constant 0 : i32
    return %arg0, %c0_i32 : i32, i32
  }
  func.func @transform_1(%arg0: i32) -> (i32, i32) {
    %c0_i32 = arith.constant 0 : i32
    %c0_i32_0 = arith.constant 0 : i32
    %c0_i32_1 = arith.constant 0 : i32
    return %c0_i32, %c0_i32_0 : i32, i32
  }
  func.func @transform_2(%arg0: i32) -> (i32, i32) {
    %c0_i32 = arith.constant 0 : i32
    %c0_i32_0 = arith.constant 0 : i32
    %c0_i32_1 = arith.constant 0 : i32
    return %c0_i32, %c0_i32_0 : i32, i32
  }
  func.func @transform_3(%arg0: i32) -> (i32, i32) {
    %c0_i32 = arith.constant 0 : i32
    %c0_i32_0 = arith.constant 0 : i32
    %c0_i32_1 = arith.constant 0 : i32
    return %c0_i32, %c0_i32_0 : i32, i32
  }
  func.func @transform_4(%arg0: i32) -> (i32, i32) {
    %c0_i32 = arith.constant 0 : i32
    %c0_i32_0 = arith.constant 0 : i32
    %c0_i32_1 = arith.constant 0 : i32
    return %c0_i32, %c0_i32_0 : i32, i32
  }
  func.func @transform_5(%arg0: i32) -> (i32, i32) {
    %c0_i32 = arith.constant 0 : i32
    %c0_i32_0 = arith.constant 0 : i32
    return %arg0, %c0_i32 : i32, i32
  }
}

</mosaic_0001>

<llo_original>
// kernel: tpu_custom_call.1
$region0: #{tpu_custom_call.1}
  #allocation0 [shape = 'u32[]', space=smem, size = 0x4, offset = 0x4, fixed_abs, tag = 'smem constant byte address 0x4 - core index']
  #allocation1 [shape = 'u32[144,128]{1,0:T(1,128)}', space=vmem, size = 0x12000, scoped, tag = 'internal scratch']
  %s0 = inlined_call_operand.vmem [shape: f32[8,5], index: 0, kind: input, shape index: {}]
  %s1 = inlined_call_operand.vmem [shape: f32[5,1024], index: 1, kind: input, shape index: {}]
  %s2 = inlined_call_operand.vmem [shape: f32[1,1024], index: 2, kind: input, shape index: {}]
  %s3 = inlined_call_operand.vmem [shape: f32[1024,4], index: 3, kind: input, shape index: {}]
  %s4 = inlined_call_operand.vmem [shape: f32[1,4], index: 4, kind: input, shape index: {}]
  %s5 = inlined_call_operand.vmem [shape: f32[8,4], index: 5, kind: output, shape index: {}]
  %s6 = sld [smem:[#allocation0]]
  $region30: #{tpu_custom_call.1} parent=0
    _
  %s8 = ssub.s32 1, %s6
  %s9 = scalar_select 0, %s8, %s6
  // Predicated region
  $region2: #{tpu_custom_call.1} parent=0 // pred_check
    _
  $region3: #{tpu_custom_call.1} parent=0 // pred_check_branch
    %11 = sbr.rel (0) target = $region5
  $region4: #{tpu_custom_call.1} parent=0 // pred_region
    _
  $region5: #{tpu_custom_call.1} parent=0 // pred_fallthru
    _
  // Predicated region
  $region6: #{tpu_custom_call.1} parent=0 // pred_check
    _
  $region7: #{tpu_custom_call.1} parent=0 // pred_check_branch
    %13 = sbr.rel (0) target = $region9
  $region8: #{tpu_custom_call.1} parent=0 // pred_region
    _
  $region9: #{tpu_custom_call.1} parent=0 // pred_fallthru
    _
  // Predicated region
  $region10: #{tpu_custom_call.1} parent=0 // pred_check
    _
  $region11: #{tpu_custom_call.1} parent=0 // pred_check_branch
    %15 = sbr.rel (0) target = $region13
  $region12: #{tpu_custom_call.1} parent=0 // pred_region
    _
  $region13: #{tpu_custom_call.1} parent=0 // pred_fallthru
    _
  // Predicated region
  $region14: #{tpu_custom_call.1} parent=0 // pred_check
    _
  $region15: #{tpu_custom_call.1} parent=0 // pred_check_branch
    %17 = sbr.rel (0) target = $region17
  $region16: #{tpu_custom_call.1} parent=0 // pred_region
    _
  $region17: #{tpu_custom_call.1} parent=0 // pred_fallthru
    _
  // Predicated region
  $region18: #{tpu_custom_call.1} parent=0 // pred_check
    _
  $region19: #{tpu_custom_call.1} parent=0 // pred_check_branch
    %19 = sbr.rel (0) target = $region21
  $region20: #{tpu_custom_call.1} parent=0 // pred_region
    _
  $region21: #{tpu_custom_call.1} parent=0 // pred_fallthru
    _
  %v20 = vld [vmem:[%s0] sm:$0xff]
  %v21 = vld [vmem:[%s1] sm:$0x1f]
  %v22 = vld [vmem:[%s1 + $0x8] sm:$0x1f]
  %v23 = vld [vmem:[%s1 + $0x10] sm:$0x1f]
  %v24 = vld [vmem:[%s1 + $0x18] sm:$0x1f]
  %v25 = vld [vmem:[%s1 + $0x20] sm:$0x1f]
  %v26 = vld [vmem:[%s1 + $0x28] sm:$0x1f]
  %v27 = vld [vmem:[%s1 + $0x30] sm:$0x1f]
  %v28 = vld [vmem:[%s1 + $0x38] sm:$0x1f]
  %v29 = vld [vmem:[%s2] sm:$0xff]
  %v31 = vlaneseq
  %v32 = vshrl.u32 %v31, 7
  %v33 = vsub.s32 0, %v32
  %v34 = vrot.slane %v29, %v33
  %v35 = vlaneseq
  %v36 = vshrl.u32 %v35, 7
  %v37 = vsub.s32 1, %v36
  %v38 = vrot.slane %v29, %v37
  %v39 = vlaneseq
  %v40 = vshrl.u32 %v39, 7
  %v41 = vsub.s32 2, %v40
  %v42 = vrot.slane %v29, %v41
  %v43 = vlaneseq
  %v44 = vshrl.u32 %v43, 7
  %v45 = vsub.s32 3, %v44
  %v46 = vrot.slane %v29, %v45
  %v47 = vlaneseq
  %v48 = vshrl.u32 %v47, 7
  %v49 = vsub.s32 4, %v48
  %v50 = vrot.slane %v29, %v49
  %v51 = vlaneseq
  %v52 = vshrl.u32 %v51, 7
  %v53 = vsub.s32 5, %v52
  %v54 = vrot.slane %v29, %v53
  %v55 = vlaneseq
  %v56 = vshrl.u32 %v55, 7
  %v57 = vsub.s32 6, %v56
  %v58 = vrot.slane %v29, %v57
  %v59 = vlaneseq
  %v60 = vshrl.u32 %v59, 7
  %v61 = vsub.s32 7, %v60
  %v62 = vrot.slane %v29, %v61
  %vm71 = vcmask 39936
  %v73 = vsel %vm71, %v20, 0
  %vm75 = vcmask 1044480
  %v77 = vsel %vm75, %v21, 0
  %v80 = vsel %vm75, %v22, 0
  %v83 = vsel %vm75, %v23, 0
  %v86 = vsel %vm75, %v24, 0
  %v89 = vsel %vm75, %v25, 0
  %v92 = vsel %vm75, %v26, 0
  %v95 = vsel %vm75, %v27, 0
  %v98 = vsel %vm75, %v28, 0
  %100 = vmatprep.subr.mxu0 %v80
  %101 = vmatpush1.msra.mxu0 %v77
  %102 = vmatprep.subr.mxu0 0.0
  %103 = vmatpush1.msra.mxu0 0.0
  %104 = vmatprep.subr.mxu0 0.0
  %105 = vmatpush1.msra.mxu0 0.0
  %106 = vmatprep.subr.mxu0 0.0
  %107 = vmatpush1.msra.mxu0 0.0
  %108 = vmatprep.subr.mxu0 0.0
  %109 = vmatpush1.msra.mxu0 0.0
  %110 = vmatprep.subr.mxu0 0.0
  %111 = vmatpush1.msra.mxu0 0.0
  %112 = vmatprep.subr.mxu0 0.0
  %113 = vmatpush1.msra.mxu0 0.0
  %114 = vmatprep.subr.mxu0 0.0
  %115 = vmatpush1.msra.mxu0 0.0
  %116 = vmatprep.subr.mxu0 0.0
  %117 = vmatpush1.msra.mxu0 0.0
  %118 = vmatprep.subr.mxu0 0.0
  %119 = vmatpush1.msra.mxu0 0.0
  %120 = vmatprep.subr.mxu0 0.0
  %121 = vmatpush1.msra.mxu0 0.0
  %122 = vmatprep.subr.mxu0 0.0
  %123 = vmatpush1.msra.mxu0 0.0
  %124 = vmatprep.subr.mxu0 0.0
  %125 = vmatpush1.msra.mxu0 0.0
  %126 = vmatprep.subr.mxu0 0.0
  %127 = vmatpush1.msra.mxu0 0.0
  %128 = vmatprep.subr.mxu0 0.0
  %129 = vmatpush1.msra.mxu0 0.0
  %130 = vmatprep.subr.mxu0 0.0
  %131 = vmatpush1.msra.mxu0 0.0
  %132 = vmatprep.subr.mxu0 0.0
  %133 = vmatpush1.msra.mxu0 0.0
  %134 = vmatprep.subr.mxu0 0.0
  %135 = vmatpush1.msra.mxu0 0.0
  %136 = vmatprep.subr.mxu0 0.0
  %137 = vmatpush1.msra.mxu0 0.0
  %138 = vmatprep.subr.mxu0 0.0
  %139 = vmatpush1.msra.mxu0 0.0
  %140 = vmatprep.subr.mxu0 0.0
  %141 = vmatpush1.msra.mxu0 0.0
  %142 = vmatprep.subr.mxu0 0.0
  %143 = vmatpush1.msra.mxu0 0.0
  %144 = vmatprep.subr.mxu0 0.0
  %145 = vmatpush1.msra.mxu0 0.0
  %146 = vmatprep.subr.mxu0 0.0
  %147 = vmatpush1.msra.mxu0 0.0
  %148 = vmatprep.subr.mxu0 0.0
  %149 = vmatpush1.msra.mxu0 0.0
  %150 = vmatprep.subr.mxu0 0.0
  %151 = vmatpush1.msra.mxu0 0.0
  %152 = vmatprep.subr.mxu0 0.0
  %153 = vmatpush1.msra.mxu0 0.0
  %154 = vmatprep.subr.mxu0 0.0
  %155 = vmatpush1.msra.mxu0 0.0
  %156 = vmatprep.subr.mxu0 0.0
  %157 = vmatpush1.msra.mxu0 0.0
  %158 = vmatprep.subr.mxu0 0.0
  %159 = vmatpush1.msra.mxu0 0.0
  %160 = vmatprep.subr.mxu0 0.0
  %161 = vmatpush1.msra.mxu0 0.0
  %162 = vmatprep.subr.mxu0 0.0
  %163 = vmatpush1.msra.mxu0 0.0
  %164 = vmatprep.mubr.f32.mxu0 0.0
  %165 = vmatmul.mubr.f32.gmra.mrb[0].mxu0 %v73
  %v166 = vpop.f32.mrb[0].mxu0
  %v167 = vadd.f32 %v34, %v166
  %v168 = vpop.f32.mrb[0].mxu0
  %v169 = vadd.f32 %v38, %v168
  %170 = vdwg.mxu0
  %171 = vmatprep.subr.mxu0 %v86
  %172 = vmatpush1.msra.mxu0 %v83
  %173 = vmatprep.subr.mxu0 0.0
  %174 = vmatpush1.msra.mxu0 0.0
  %175 = vmatprep.subr.mxu0 0.0
  %176 = vmatpush1.msra.mxu0 0.0
  %177 = vmatprep.subr.mxu0 0.0
  %178 = vmatpush1.msra.mxu0 0.0
  %179 = vmatprep.subr.mxu0 0.0
  %180 = vmatpush1.msra.mxu0 0.0
  %181 = vmatprep.subr.mxu0 0.0
  %182 = vmatpush1.msra.mxu0 0.0
  %183 = vmatprep.subr.mxu0 0.0
  %184 = vmatpush1.msra.mxu0 0.0
  %185 = vmatprep.subr.mxu0 0.0
  %186 = vmatpush1.msra.mxu0 0.0
  %187 = vmatprep.subr.mxu0 0.0
  %188 = vmatpush1.msra.mxu0 0.0
  %189 = vmatprep.subr.mxu0 0.0
  %190 = vmatpush1.msra.mxu0 0.0
  %191 = vmatprep.subr.mxu0 0.0
  %192 = vmatpush1.msra.mxu0 0.0
  %193 = vmatprep.subr.mxu0 0.0
  %194 = vmatpush1.msra.mxu0 0.0
  %195 = vmatprep.subr.mxu0 0.0
  %196 = vmatpush1.msra.mxu0 0.0
  %197 = vmatprep.subr.mxu0 0.0
  %198 = vmatpush1.msra.mxu0 0.0
  %199 = vmatprep.subr.mxu0 0.0
  %200 = vmatpush1.msra.mxu0 0.0
  %201 = vmatprep.subr.mxu0 0.0
  %202 = vmatpush1.msra.mxu0 0.0
  %203 = vmatprep.subr.mxu0 0.0
  %204 = vmatpush1.msra.mxu0 0.0
  %205 = vmatprep.subr.mxu0 0.0
  %206 = vmatpush1.msra.mxu0 0.0
  %207 = vmatprep.subr.mxu0 0.0
  %208 = vmatpush1.msra.mxu0 0.0
  %209 = vmatprep.subr.mxu0 0.0
  %210 = vmatpush1.msra.mxu0 0.0
  %211 = vmatprep.subr.mxu0 0.0
  %212 = vmatpush1.msra.mxu0 0.0
  %213 = vmatprep.subr.mxu0 0.0
  %214 = vmatpush1.msra.mxu0 0.0
  %215 = vmatprep.subr.mxu0 0.0
  %216 = vmatpush1.msra.mxu0 0.0
  %217 = vmatprep.subr.mxu0 0.0
  %218 = vmatpush1.msra.mxu0 0.0
  %219 = vmatprep.subr.mxu0 0.0
  %220 = vmatpush1.msra.mxu0 0.0
  %221 = vmatprep.subr.mxu0 0.0
  %222 = vmatpush1.msra.mxu0 0.0
  %223 = vmatprep.subr.mxu0 0.0
  %224 = vmatpush1.msra.mxu0 0.0
  %225 = vmatprep.subr.mxu0 0.0
  %226 = vmatpush1.msra.mxu0 0.0
  %227 = vmatprep.subr.mxu0 0.0
  %228 = vmatpush1.msra.mxu0 0.0
  %229 = vmatprep.subr.mxu0 0.0
  %230 = vmatpush1.msra.mxu0 0.0
  %231 = vmatprep.subr.mxu0 0.0
  %232 = vmatpush1.msra.mxu0 0.0
  %233 = vmatprep.subr.mxu0 0.0
  %234 = vmatpush1.msra.mxu0 0.0
  %235 = vmatprep.mubr.f32.mxu0 0.0
  %236 = vmatmul.mubr.f32.gmra.mrb[0].mxu0 %v73
  %v237 = vpop.f32.mrb[0].mxu0
  %v238 = vadd.f32 %v42, %v237
  %v239 = vpop.f32.mrb[0].mxu0
  %v240 = vadd.f32 %v46, %v239
  %241 = vdwg.mxu0
  %242 = vmatprep.subr.mxu0 %v92
  %243 = vmatpush1.msra.mxu0 %v89
  %244 = vmatprep.subr.mxu0 0.0
  %245 = vmatpush1.msra.mxu0 0.0
  %246 = vmatprep.subr.mxu0 0.0
  %247 = vmatpush1.msra.mxu0 0.0
  %248 = vmatprep.subr.mxu0 0.0
  %249 = vmatpush1.msra.mxu0 0.0
  %250 = vmatprep.subr.mxu0 0.0
  %251 = vmatpush1.msra.mxu0 0.0
  %252 = vmatprep.subr.mxu0 0.0
  %253 = vmatpush1.msra.mxu0 0.0
  %254 = vmatprep.subr.mxu0 0.0
  %255 = vmatpush1.msra.mxu0 0.0
  %256 = vmatprep.subr.mxu0 0.0
  %257 = vmatpush1.msra.mxu0 0.0
  %258 = vmatprep.subr.mxu0 0.0
  %259 = vmatpush1.msra.mxu0 0.0
  %260 = vmatprep.subr.mxu0 0.0
  %261 = vmatpush1.msra.mxu0 0.0
  %262 = vmatprep.subr.mxu0 0.0
  %263 = vmatpush1.msra.mxu0 0.0
  %264 = vmatprep.subr.mxu0 0.0
  %265 = vmatpush1.msra.mxu0 0.0
  %266 = vmatprep.subr.mxu0 0.0
  %267 = vmatpush1.msra.mxu0 0.0
  %268 = vmatprep.subr.mxu0 0.0
  %269 = vmatpush1.msra.mxu0 0.0
  %270 = vmatprep.subr.mxu0 0.0
  %271 = vmatpush1.msra.mxu0 0.0
  %272 = vmatprep.subr.mxu0 0.0
  %273 = vmatpush1.msra.mxu0 0.0
  %274 = vmatprep.subr.mxu0 0.0
  %275 = vmatpush1.msra.mxu0 0.0
  %276 = vmatprep.subr.mxu0 0.0
  %277 = vmatpush1.msra.mxu0 0.0
  %278 = vmatprep.subr.mxu0 0.0
  %279 = vmatpush1.msra.mxu0 0.0
  %280 = vmatprep.subr.mxu0 0.0
  %281 = vmatpush1.msra.mxu0 0.0
  %282 = vmatprep.subr.mxu0 0.0
  %283 = vmatpush1.msra.mxu0 0.0
  %284 = vmatprep.subr.mxu0 0.0
  %285 = vmatpush1.msra.mxu0 0.0
  %286 = vmatprep.subr.mxu0 0.0
  %287 = vmatpush1.msra.mxu0 0.0
  %288 = vmatprep.subr.mxu0 0.0
  %289 = vmatpush1.msra.mxu0 0.0
  %290 = vmatprep.subr.mxu0 0.0
  %291 = vmatpush1.msra.mxu0 0.0
  %292 = vmatprep.subr.mxu0 0.0
  %293 = vmatpush1.msra.mxu0 0.0
  %294 = vmatprep.subr.mxu0 0.0
  %295 = vmatpush1.msra.mxu0 0.0
  %296 = vmatprep.subr.mxu0 0.0
  %297 = vmatpush1.msra.mxu0 0.0
  %298 = vmatprep.subr.mxu0 0.0
  %299 = vmatpush1.msra.mxu0 0.0
  %300 = vmatprep.subr.mxu0 0.0
  %301 = vmatpush1.msra.mxu0 0.0
  %302 = vmatprep.subr.mxu0 0.0
  %303 = vmatpush1.msra.mxu0 0.0
  %304 = vmatprep.subr.mxu0 0.0
  %305 = vmatpush1.msra.mxu0 0.0
  %306 = vmatprep.mubr.f32.mxu0 0.0
  %307 = vmatmul.mubr.f32.gmra.mrb[0].mxu0 %v73
  %v308 = vpop.f32.mrb[0].mxu0
  %v309 = vadd.f32 %v50, %v308
  %v310 = vpop.f32.mrb[0].mxu0
  %v311 = vadd.f32 %v54, %v310
  %312 = vdwg.mxu0
  %313 = vmatprep.subr.mxu0 %v98
  %314 = vmatpush1.msra.mxu0 %v95
  %315 = vmatprep.subr.mxu0 0.0
  %316 = vmatpush1.msra.mxu0 0.0
  %317 = vmatprep.subr.mxu0 0.0
  %318 = vmatpush1.msra.mxu0 0.0
  %319 = vmatprep.subr.mxu0 0.0
  %320 = vmatpush1.msra.mxu0 0.0
  %321 = vmatprep.subr.mxu0 0.0
  %322 = vmatpush1.msra.mxu0 0.0
  %323 = vmatprep.subr.mxu0 0.0
  %324 = vmatpush1.msra.mxu0 0.0
  %325 = vmatprep.subr.mxu0 0.0
  %326 = vmatpush1.msra.mxu0 0.0
  %327 = vmatprep.subr.mxu0 0.0
  %328 = vmatpush1.msra.mxu0 0.0
  %329 = vmatprep.subr.mxu0 0.0
  %330 = vmatpush1.msra.mxu0 0.0
  %331 = vmatprep.subr.mxu0 0.0
  %332 = vmatpush1.msra.mxu0 0.0
  %333 = vmatprep.subr.mxu0 0.0
  %334 = vmatpush1.msra.mxu0 0.0
  %335 = vmatprep.subr.mxu0 0.0
  %336 = vmatpush1.msra.mxu0 0.0
  %337 = vmatprep.subr.mxu0 0.0
  %338 = vmatpush1.msra.mxu0 0.0
  %339 = vmatprep.subr.mxu0 0.0
  %340 = vmatpush1.msra.mxu0 0.0
  %341 = vmatprep.subr.mxu0 0.0
  %342 = vmatpush1.msra.mxu0 0.0
  %343 = vmatprep.subr.mxu0 0.0
  %344 = vmatpush1.msra.mxu0 0.0
  %345 = vmatprep.subr.mxu0 0.0
  %346 = vmatpush1.msra.mxu0 0.0
  %347 = vmatprep.subr.mxu0 0.0
  %348 = vmatpush1.msra.mxu0 0.0
  %349 = vmatprep.subr.mxu0 0.0
  %350 = vmatpush1.msra.mxu0 0.0
  %351 = vmatprep.subr.mxu0 0.0
  %352 = vmatpush1.msra.mxu0 0.0
  %353 = vmatprep.subr.mxu0 0.0
  %354 = vmatpush1.msra.mxu0 0.0
  %355 = vmatprep.subr.mxu0 0.0
  %356 = vmatpush1.msra.mxu0 0.0
  %357 = vmatprep.subr.mxu0 0.0
  %358 = vmatpush1.msra.mxu0 0.0
  %359 = vmatprep.subr.mxu0 0.0
  %360 = vmatpush1.msra.mxu0 0.0
  %361 = vmatprep.subr.mxu0 0.0
  %362 = vmatpush1.msra.mxu0 0.0
  %363 = vmatprep.subr.mxu0 0.0
  %364 = vmatpush1.msra.mxu0 0.0
  %365 = vmatprep.subr.mxu0 0.0
  %366 = vmatpush1.msra.mxu0 0.0
  %367 = vmatprep.subr.mxu0 0.0
  %368 = vmatpush1.msra.mxu0 0.0
  %369 = vmatprep.subr.mxu0 0.0
  %370 = vmatpush1.msra.mxu0 0.0
  %371 = vmatprep.subr.mxu0 0.0
  %372 = vmatpush1.msra.mxu0 0.0
  %373 = vmatprep.subr.mxu0 0.0
  %374 = vmatpush1.msra.mxu0 0.0
  %375 = vmatprep.subr.mxu0 0.0
  %376 = vmatpush1.msra.mxu0 0.0
  %377 = vmatprep.mubr.f32.mxu0 0.0
  %378 = vmatmul.mubr.f32.gmra.mrb[0].mxu0 %v73
  %v379 = vpop.f32.mrb[0].mxu0
  %v380 = vadd.f32 %v58, %v379
  %v381 = vpop.f32.mrb[0].mxu0
  %v382 = vadd.f32 %v62, %v381
  %383 = vdwg.mxu0
  %v384 = vmax.f32 %v167, 0.0
  %v385 = vmax.f32 %v169, 0.0
  %v386 = vmax.f32 %v238, 0.0
  %v387 = vmax.f32 %v240, 0.0
  %v388 = vmax.f32 %v309, 0.0
  %v389 = vmax.f32 %v311, 0.0
  %v390 = vmax.f32 %v380, 0.0
  %v391 = vmax.f32 %v382, 0.0
  %v392 = vld [vmem:[%s3] sm:$0xff]
  %v393 = vld [vmem:[%s3 + $0x8] sm:$0xff]
  %v394 = vld [vmem:[%s3 + $0x10] sm:$0xff]
  %v395 = vld [vmem:[%s3 + $0x18] sm:$0xff]
  %v396 = vld [vmem:[%s3 + $0x20] sm:$0xff]
  %v397 = vld [vmem:[%s3 + $0x28] sm:$0xff]
  %v398 = vld [vmem:[%s3 + $0x30] sm:$0xff]
  %v399 = vld [vmem:[%s3 + $0x38] sm:$0xff]
  %v400 = vld [vmem:[%s3 + $0x40] sm:$0xff]
  %v401 = vld [vmem:[%s3 + $0x48] sm:$0xff]
  %v402 = vld [vmem:[%s3 + $0x50] sm:$0xff]
  %v403 = vld [vmem:[%s3 + $0x58] sm:$0xff]
  %v404 = vld [vmem:[%s3 + $0x60] sm:$0xff]
  %v405 = vld [vmem:[%s3 + $0x68] sm:$0xff]
  %v406 = vld [vmem:[%s3 + $0x70] sm:$0xff]
  %v407 = vld [vmem:[%s3 + $0x78] sm:$0xff]
  %v408 = vld [vmem:[%s3 + $0x80] sm:$0xff]
  %v409 = vld [vmem:[%s3 + $0x88] sm:$0xff]
  %v410 = vld [vmem:[%s3 + $0x90] sm:$0xff]
  %v411 = vld [vmem:[%s3 + $0x98] sm:$0xff]
  %v412 = vld [vmem:[%s3 + $0xa0] sm:$0xff]
  %v413 = vld [vmem:[%s3 + $0xa8] sm:$0xff]
  %v414 = vld [vmem:[%s3 + $0xb0] sm:$0xff]
  %v415 = vld [vmem:[%s3 + $0xb8] sm:$0xff]
  %v416 = vld [vmem:[%s3 + $0xc0] sm:$0xff]
  %v417 = vld [vmem:[%s3 + $0xc8] sm:$0xff]
  %v418 = vld [vmem:[%s3 + $0xd0] sm:$0xff]
  %v419 = vld [vmem:[%s3 + $0xd8] sm:$0xff]
  %v420 = vld [vmem:[%s3 + $0xe0] sm:$0xff]
  %v421 = vld [vmem:[%s3 + $0xe8] sm:$0xff]
  %v422 = vld [vmem:[%s3 + $0xf0] sm:$0xff]
  %v423 = vld [vmem:[%s3 + $0xf8] sm:$0xff]
  %v424 = vld [vmem:[%s3 + $0x100] sm:$0xff]
  %v425 = vld [vmem:[%s3 + $0x108] sm:$0xff]
  %v426 = vld [vmem:[%s3 + $0x110] sm:$0xff]
  %v427 = vld [vmem:[%s3 + $0x118] sm:$0xff]
  %v428 = vld [vmem:[%s3 + $0x120] sm:$0xff]
  %v429 = vld [vmem:[%s3 + $0x128] sm:$0xff]
  %v430 = vld [vmem:[%s3 + $0x130] sm:$0xff]
  %v431 = vld [vmem:[%s3 + $0x138] sm:$0xff]
  %v432 = vld [vmem:[%s3 + $0x140] sm:$0xff]
  %v433 = vld [vmem:[%s3 + $0x148] sm:$0xff]
  %v434 = vld [vmem:[%s3 + $0x150] sm:$0xff]
  %v435 = vld [vmem:[%s3 + $0x158] sm:$0xff]
  %v436 = vld [vmem:[%s3 + $0x160] sm:$0xff]
  %v437 = vld [vmem:[%s3 + $0x168] sm:$0xff]
  %v438 = vld [vmem:[%s3 + $0x170] sm:$0xff]
  %v439 = vld [vmem:[%s3 + $0x178] sm:$0xff]
  %v440 = vld [vmem:[%s3 + $0x180] sm:$0xff]
  %v441 = vld [vmem:[%s3 + $0x188] sm:$0xff]
  %v442 = vld [vmem:[%s3 + $0x190] sm:$0xff]
  %v443 = vld [vmem:[%s3 + $0x198] sm:$0xff]
  %v444 = vld [vmem:[%s3 + $0x1a0] sm:$0xff]
  %v445 = vld [vmem:[%s3 + $0x1a8] sm:$0xff]
  %v446 = vld [vmem:[%s3 + $0x1b0] sm:$0xff]
  %v447 = vld [vmem:[%s3 + $0x1b8] sm:$0xff]
  %v448 = vld [vmem:[%s3 + $0x1c0] sm:$0xff]
  %v449 = vld [vmem:[%s3 + $0x1c8] sm:$0xff]
  %v450 = vld [vmem:[%s3 + $0x1d0] sm:$0xff]
  %v451 = vld [vmem:[%s3 + $0x1d8] sm:$0xff]
  %v452 = vld [vmem:[%s3 + $0x1e0] sm:$0xff]
  %v453 = vld [vmem:[%s3 + $0x1e8] sm:$0xff]
  %v454 = vld [vmem:[%s3 + $0x1f0] sm:$0xff]
  %v455 = vld [vmem:[%s3 + $0x1f8] sm:$0xff]
  %v456 = vld [vmem:[%s3 + $0x200] sm:$0xff]
  %v457 = vld [vmem:[%s3 + $0x208] sm:$0xff]
  %v458 = vld [vmem:[%s3 + $0x210] sm:$0xff]
  %v459 = vld [vmem:[%s3 + $0x218] sm:$0xff]
  %v460 = vld [vmem:[%s3 + $0x220] sm:$0xff]
  %v461 = vld [vmem:[%s3 + $0x228] sm:$0xff]
  %v462 = vld [vmem:[%s3 + $0x230] sm:$0xff]
  %v463 = vld [vmem:[%s3 + $0x238] sm:$0xff]
  %v464 = vld [vmem:[%s3 + $0x240] sm:$0xff]
  %v465 = vld [vmem:[%s3 + $0x248] sm:$0xff]
  %v466 = vld [vmem:[%s3 + $0x250] sm:$0xff]
  %v467 = vld [vmem:[%s3 + $0x258] sm:$0xff]
  %v468 = vld [vmem:[%s3 + $0x260] sm:$0xff]
  %v469 = vld [vmem:[%s3 + $0x268] sm:$0xff]
  %v470 = vld [vmem:[%s3 + $0x270] sm:$0xff]
  %v471 = vld [vmem:[%s3 + $0x278] sm:$0xff]
  %v472 = vld [vmem:[%s3 + $0x280] sm:$0xff]
  %v473 = vld [vmem:[%s3 + $0x288] sm:$0xff]
  %v474 = vld [vmem:[%s3 + $0x290] sm:$0xff]
  %v475 = vld [vmem:[%s3 + $0x298] sm:$0xff]
  %v476 = vld [vmem:[%s3 + $0x2a0] sm:$0xff]
  %v477 = vld [vmem:[%s3 + $0x2a8] sm:$0xff]
  %v478 = vld [vmem:[%s3 + $0x2b0] sm:$0xff]
  %v479 = vld [vmem:[%s3 + $0x2b8] sm:$0xff]
  %v480 = vld [vmem:[%s3 + $0x2c0] sm:$0xff]
  %v481 = vld [vmem:[%s3 + $0x2c8] sm:$0xff]
  %v482 = vld [vmem:[%s3 + $0x2d0] sm:$0xff]
  %v483 = vld [vmem:[%s3 + $0x2d8] sm:$0xff]
  %v484 = vld [vmem:[%s3 + $0x2e0] sm:$0xff]
  %v485 = vld [vmem:[%s3 + $0x2e8] sm:$0xff]
  %v486 = vld [vmem:[%s3 + $0x2f0] sm:$0xff]
  %v487 = vld [vmem:[%s3 + $0x2f8] sm:$0xff]
  %v488 = vld [vmem:[%s3 + $0x300] sm:$0xff]
  %v489 = vld [vmem:[%s3 + $0x308] sm:$0xff]
  %v490 = vld [vmem:[%s3 + $0x310] sm:$0xff]
  %v491 = vld [vmem:[%s3 + $0x318] sm:$0xff]
  %v492 = vld [vmem:[%s3 + $0x320] sm:$0xff]
  %v493 = vld [vmem:[%s3 + $0x328] sm:$0xff]
  %v494 = vld [vmem:[%s3 + $0x330] sm:$0xff]
  %v495 = vld [vmem:[%s3 + $0x338] sm:$0xff]
  %v496 = vld [vmem:[%s3 + $0x340] sm:$0xff]
  %v497 = vld [vmem:[%s3 + $0x348] sm:$0xff]
  %v498 = vld [vmem:[%s3 + $0x350] sm:$0xff]
  %v499 = vld [vmem:[%s3 + $0x358] sm:$0xff]
  %v500 = vld [vmem:[%s3 + $0x360] sm:$0xff]
  %v501 = vld [vmem:[%s3 + $0x368] sm:$0xff]
  %v502 = vld [vmem:[%s3 + $0x370] sm:$0xff]
  %v503 = vld [vmem:[%s3 + $0x378] sm:$0xff]
  %v504 = vld [vmem:[%s3 + $0x380] sm:$0xff]
  %v505 = vld [vmem:[%s3 + $0x388] sm:$0xff]
  %v506 = vld [vmem:[%s3 + $0x390] sm:$0xff]
  %v507 = vld [vmem:[%s3 + $0x398] sm:$0xff]
  %v508 = vld [vmem:[%s3 + $0x3a0] sm:$0xff]
  %v509 = vld [vmem:[%s3 + $0x3a8] sm:$0xff]
  %v510 = vld [vmem:[%s3 + $0x3b0] sm:$0xff]
  %v511 = vld [vmem:[%s3 + $0x3b8] sm:$0xff]
  %v512 = vld [vmem:[%s3 + $0x3c0] sm:$0xff]
  %v513 = vld [vmem:[%s3 + $0x3c8] sm:$0xff]
  %v514 = vld [vmem:[%s3 + $0x3d0] sm:$0xff]
  %v515 = vld [vmem:[%s3 + $0x3d8] sm:$0xff]
  %v516 = vld [vmem:[%s3 + $0x3e0] sm:$0xff]
  %v517 = vld [vmem:[%s3 + $0x3e8] sm:$0xff]
  %v518 = vld [vmem:[%s3 + $0x3f0] sm:$0xff]
  %v519 = vld [vmem:[%s3 + $0x3f8] sm:$0xff]
  %v520 = vld [vmem:[%s4] sm:$0x1]
  %v522 = vlaneseq
  %v523 = vshrl.u32 %v522, 7
  %v524 = vsub.s32 0, %v523
  %v525 = vrot.slane %v520, %v524
  %527 = vmatprep.subr.mxu0 0.0
  %528 = vmatpush1.msra.mxu0 %v392
  %529 = vmatprep.subr.mxu0 0.0
  %530 = vmatpush1.msra.mxu0 %v393
  %531 = vmatprep.subr.mxu0 0.0
  %532 = vmatpush1.msra.mxu0 %v394
  %533 = vmatprep.subr.mxu0 0.0
  %534 = vmatpush1.msra.mxu0 %v395
  %535 = vmatprep.subr.mxu0 0.0
  %536 = vmatpush1.msra.mxu0 %v396
  %537 = vmatprep.subr.mxu0 0.0
  %538 = vmatpush1.msra.mxu0 %v397
  %539 = vmatprep.subr.mxu0 0.0
  %540 = vmatpush1.msra.mxu0 %v398
  %541 = vmatprep.subr.mxu0 0.0
  %542 = vmatpush1.msra.mxu0 %v399
  %543 = vmatprep.subr.mxu0 0.0
  %544 = vmatpush1.msra.mxu0 %v400
  %545 = vmatprep.subr.mxu0 0.0
  %546 = vmatpush1.msra.mxu0 %v401
  %547 = vmatprep.subr.mxu0 0.0
  %548 = vmatpush1.msra.mxu0 %v402
  %549 = vmatprep.subr.mxu0 0.0
  %550 = vmatpush1.msra.mxu0 %v403
  %551 = vmatprep.subr.mxu0 0.0
  %552 = vmatpush1.msra.mxu0 %v404
  %553 = vmatprep.subr.mxu0 0.0
  %554 = vmatpush1.msra.mxu0 %v405
  %555 = vmatprep.subr.mxu0 0.0
  %556 = vmatpush1.msra.mxu0 %v406
  %557 = vmatprep.subr.mxu0 0.0
  %558 = vmatpush1.msra.mxu0 %v407
  %559 = vmatprep.subr.mxu0 0.0
  %560 = vmatpush1.msra.mxu0 %v408
  %561 = vmatprep.subr.mxu0 0.0
  %562 = vmatpush1.msra.mxu0 %v409
  %563 = vmatprep.subr.mxu0 0.0
  %564 = vmatpush1.msra.mxu0 %v410
  %565 = vmatprep.subr.mxu0 0.0
  %566 = vmatpush1.msra.mxu0 %v411
  %567 = vmatprep.subr.mxu0 0.0
  %568 = vmatpush1.msra.mxu0 %v412
  %569 = vmatprep.subr.mxu0 0.0
  %570 = vmatpush1.msra.mxu0 %v413
  %571 = vmatprep.subr.mxu0 0.0
  %572 = vmatpush1.msra.mxu0 %v414
  %573 = vmatprep.subr.mxu0 0.0
  %574 = vmatpush1.msra.mxu0 %v415
  %575 = vmatprep.subr.mxu0 0.0
  %576 = vmatpush1.msra.mxu0 %v416
  %577 = vmatprep.subr.mxu0 0.0
  %578 = vmatpush1.msra.mxu0 %v417
  %579 = vmatprep.subr.mxu0 0.0
  %580 = vmatpush1.msra.mxu0 %v418
  %581 = vmatprep.subr.mxu0 0.0
  %582 = vmatpush1.msra.mxu0 %v419
  %583 = vmatprep.subr.mxu0 0.0
  %584 = vmatpush1.msra.mxu0 %v420
  %585 = vmatprep.subr.mxu0 0.0
  %586 = vmatpush1.msra.mxu0 %v421
  %587 = vmatprep.subr.mxu0 0.0
  %588 = vmatpush1.msra.mxu0 %v422
  %589 = vmatprep.subr.mxu0 0.0
  %590 = vmatpush1.msra.mxu0 %v423
  %591 = vmatprep.mubr.f32.mxu0 %v385
  %592 = vmatmul.mubr.f32.gmra.mrb[0].mxu0 %v384
  %v593 = vpop.f32.mrb[0].mxu0
  %v594 = vadd.f32 %v525, %v593
  %v595 = vpop.f32.mrb[0].mxu0
  %596 = vdwg.mxu0
  %597 = vmatprep.subr.mxu0 0.0
  %598 = vmatpush1.msra.mxu0 %v424
  %599 = vmatprep.subr.mxu0 0.0
  %600 = vmatpush1.msra.mxu0 %v425
  %601 = vmatprep.subr.mxu0 0.0
  %602 = vmatpush1.msra.mxu0 %v426
  %603 = vmatprep.subr.mxu0 0.0
  %604 = vmatpush1.msra.mxu0 %v427
  %605 = vmatprep.subr.mxu0 0.0
  %606 = vmatpush1.msra.mxu0 %v428
  %607 = vmatprep.subr.mxu0 0.0
  %608 = vmatpush1.msra.mxu0 %v429
  %609 = vmatprep.subr.mxu0 0.0
  %610 = vmatpush1.msra.mxu0 %v430
  %611 = vmatprep.subr.mxu0 0.0
  %612 = vmatpush1.msra.mxu0 %v431
  %613 = vmatprep.subr.mxu0 0.0
  %614 = vmatpush1.msra.mxu0 %v432
  %615 = vmatprep.subr.mxu0 0.0
  %616 = vmatpush1.msra.mxu0 %v433
  %617 = vmatprep.subr.mxu0 0.0
  %618 = vmatpush1.msra.mxu0 %v434
  %619 = vmatprep.subr.mxu0 0.0
  %620 = vmatpush1.msra.mxu0 %v435
  %621 = vmatprep.subr.mxu0 0.0
  %622 = vmatpush1.msra.mxu0 %v436
  %623 = vmatprep.subr.mxu0 0.0
  %624 = vmatpush1.msra.mxu0 %v437
  %625 = vmatprep.subr.mxu0 0.0
  %626 = vmatpush1.msra.mxu0 %v438
  %627 = vmatprep.subr.mxu0 0.0
  %628 = vmatpush1.msra.mxu0 %v439
  %629 = vmatprep.subr.mxu0 0.0
  %630 = vmatpush1.msra.mxu0 %v440
  %631 = vmatprep.subr.mxu0 0.0
  %632 = vmatpush1.msra.mxu0 %v441
  %633 = vmatprep.subr.mxu0 0.0
  %634 = vmatpush1.msra.mxu0 %v442
  %635 = vmatprep.subr.mxu0 0.0
  %636 = vmatpush1.msra.mxu0 %v443
  %637 = vmatprep.subr.mxu0 0.0
  %638 = vmatpush1.msra.mxu0 %v444
  %639 = vmatprep.subr.mxu0 0.0
  %640 = vmatpush1.msra.mxu0 %v445
  %641 = vmatprep.subr.mxu0 0.0
  %642 = vmatpush1.msra.mxu0 %v446
  %643 = vmatprep.subr.mxu0 0.0
  %644 = vmatpush1.msra.mxu0 %v447
  %645 = vmatprep.subr.mxu0 0.0
  %646 = vmatpush1.msra.mxu0 %v448
  %647 = vmatprep.subr.mxu0 0.0
  %648 = vmatpush1.msra.mxu0 %v449
  %649 = vmatprep.subr.mxu0 0.0
  %650 = vmatpush1.msra.mxu0 %v450
  %651 = vmatprep.subr.mxu0 0.0
  %652 = vmatpush1.msra.mxu0 %v451
  %653 = vmatprep.subr.mxu0 0.0
  %654 = vmatpush1.msra.mxu0 %v452
  %655 = vmatprep.subr.mxu0 0.0
  %656 = vmatpush1.msra.mxu0 %v453
  %657 = vmatprep.subr.mxu0 0.0
  %658 = vmatpush1.msra.mxu0 %v454
  %659 = vmatprep.subr.mxu0 0.0
  %660 = vmatpush1.msra.mxu0 %v455
  %661 = vmatprep.mubr.f32.mxu0 %v387
  %662 = vmatmul.mubr.f32.gmra.mrb[0].mxu0 %v386
  %v663 = vpop.f32.mrb[0].mxu0
  %v664 = vadd.f32 %v594, %v663
  %v665 = vpop.f32.mrb[0].mxu0
  %666 = vdwg.mxu0
  %667 = vmatprep.subr.mxu0 0.0
  %668 = vmatpush1.msra.mxu0 %v456
  %669 = vmatprep.subr.mxu0 0.0
  %670 = vmatpush1.msra.mxu0 %v457
  %671 = vmatprep.subr.mxu0 0.0
  %672 = vmatpush1.msra.mxu0 %v458
  %673 = vmatprep.subr.mxu0 0.0
  %674 = vmatpush1.msra.mxu0 %v459
  %675 = vmatprep.subr.mxu0 0.0
  %676 = vmatpush1.msra.mxu0 %v460
  %677 = vmatprep.subr.mxu0 0.0
  %678 = vmatpush1.msra.mxu0 %v461
  %679 = vmatprep.subr.mxu0 0.0
  %680 = vmatpush1.msra.mxu0 %v462
  %681 = vmatprep.subr.mxu0 0.0
  %682 = vmatpush1.msra.mxu0 %v463
  %683 = vmatprep.subr.mxu0 0.0
  %684 = vmatpush1.msra.mxu0 %v464
  %685 = vmatprep.subr.mxu0 0.0
  %686 = vmatpush1.msra.mxu0 %v465
  %687 = vmatprep.subr.mxu0 0.0
  %688 = vmatpush1.msra.mxu0 %v466
  %689 = vmatprep.subr.mxu0 0.0
  %690 = vmatpush1.msra.mxu0 %v467
  %691 = vmatprep.subr.mxu0 0.0
  %692 = vmatpush1.msra.mxu0 %v468
  %693 = vmatprep.subr.mxu0 0.0
  %694 = vmatpush1.msra.mxu0 %v469
  %695 = vmatprep.subr.mxu0 0.0
  %696 = vmatpush1.msra.mxu0 %v470
  %697 = vmatprep.subr.mxu0 0.0
  %698 = vmatpush1.msra.mxu0 %v471
  %699 = vmatprep.subr.mxu0 0.0
  %700 = vmatpush1.msra.mxu0 %v472
  %701 = vmatprep.subr.mxu0 0.0
  %702 = vmatpush1.msra.mxu0 %v473
  %703 = vmatprep.subr.mxu0 0.0
  %704 = vmatpush1.msra.mxu0 %v474
  %705 = vmatprep.subr.mxu0 0.0
  %706 = vmatpush1.msra.mxu0 %v475
  %707 = vmatprep.subr.mxu0 0.0
  %708 = vmatpush1.msra.mxu0 %v476
  %709 = vmatprep.subr.mxu0 0.0
  %710 = vmatpush1.msra.mxu0 %v477
  %711 = vmatprep.subr.mxu0 0.0
  %712 = vmatpush1.msra.mxu0 %v478
  %713 = vmatprep.subr.mxu0 0.0
  %714 = vmatpush1.msra.mxu0 %v479
  %715 = vmatprep.subr.mxu0 0.0
  %716 = vmatpush1.msra.mxu0 %v480
  %717 = vmatprep.subr.mxu0 0.0
  %718 = vmatpush1.msra.mxu0 %v481
  %719 = vmatprep.subr.mxu0 0.0
  %720 = vmatpush1.msra.mxu0 %v482
  %721 = vmatprep.subr.mxu0 0.0
  %722 = vmatpush1.msra.mxu0 %v483
  %723 = vmatprep.subr.mxu0 0.0
  %724 = vmatpush1.msra.mxu0 %v484
  %725 = vmatprep.subr.mxu0 0.0
  %726 = vmatpush1.msra.mxu0 %v485
  %727 = vmatprep.subr.mxu0 0.0
  %728 = vmatpush1.msra.mxu0 %v486
  %729 = vmatprep.subr.mxu0 0.0
  %730 = vmatpush1.msra.mxu0 %v487
  %731 = vmatprep.mubr.f32.mxu0 %v389
  %732 = vmatmul.mubr.f32.gmra.mrb[0].mxu0 %v388
  %v733 = vpop.f32.mrb[0].mxu0
  %v734 = vadd.f32 %v664, %v733
  %v735 = vpop.f32.mrb[0].mxu0
  %736 = vdwg.mxu0
  %737 = vmatprep.subr.mxu0 0.0
  %738 = vmatpush1.msra.mxu0 %v488
  %739 = vmatprep.subr.mxu0 0.0
  %740 = vmatpush1.msra.mxu0 %v489
  %741 = vmatprep.subr.mxu0 0.0
  %742 = vmatpush1.msra.mxu0 %v490
  %743 = vmatprep.subr.mxu0 0.0
  %744 = vmatpush1.msra.mxu0 %v491
  %745 = vmatprep.subr.mxu0 0.0
  %746 = vmatpush1.msra.mxu0 %v492
  %747 = vmatprep.subr.mxu0 0.0
  %748 = vmatpush1.msra.mxu0 %v493
  %749 = vmatprep.subr.mxu0 0.0
  %750 = vmatpush1.msra.mxu0 %v494
  %751 = vmatprep.subr.mxu0 0.0
  %752 = vmatpush1.msra.mxu0 %v495
  %753 = vmatprep.subr.mxu0 0.0
  %754 = vmatpush1.msra.mxu0 %v496
  %755 = vmatprep.subr.mxu0 0.0
  %756 = vmatpush1.msra.mxu0 %v497
  %757 = vmatprep.subr.mxu0 0.0
  %758 = vmatpush1.msra.mxu0 %v498
  %759 = vmatprep.subr.mxu0 0.0
  %760 = vmatpush1.msra.mxu0 %v499
  %761 = vmatprep.subr.mxu0 0.0
  %762 = vmatpush1.msra.mxu0 %v500
  %763 = vmatprep.subr.mxu0 0.0
  %764 = vmatpush1.msra.mxu0 %v501
  %765 = vmatprep.subr.mxu0 0.0
  %766 = vmatpush1.msra.mxu0 %v502
  %767 = vmatprep.subr.mxu0 0.0
  %768 = vmatpush1.msra.mxu0 %v503
  %769 = vmatprep.subr.mxu0 0.0
  %770 = vmatpush1.msra.mxu0 %v504
  %771 = vmatprep.subr.mxu0 0.0
  %772 = vmatpush1.msra.mxu0 %v505
  %773 = vmatprep.subr.mxu0 0.0
  %774 = vmatpush1.msra.mxu0 %v506
  %775 = vmatprep.subr.mxu0 0.0
  %776 = vmatpush1.msra.mxu0 %v507
  %777 = vmatprep.subr.mxu0 0.0
  %778 = vmatpush1.msra.mxu0 %v508
  %779 = vmatprep.subr.mxu0 0.0
  %780 = vmatpush1.msra.mxu0 %v509
  %781 = vmatprep.subr.mxu0 0.0
  %782 = vmatpush1.msra.mxu0 %v510
  %783 = vmatprep.subr.mxu0 0.0
  %784 = vmatpush1.msra.mxu0 %v511
  %785 = vmatprep.subr.mxu0 0.0
  %786 = vmatpush1.msra.mxu0 %v512
  %787 = vmatprep.subr.mxu0 0.0
  %788 = vmatpush1.msra.mxu0 %v513
  %789 = vmatprep.subr.mxu0 0.0
  %790 = vmatpush1.msra.mxu0 %v514
  %791 = vmatprep.subr.mxu0 0.0
  %792 = vmatpush1.msra.mxu0 %v515
  %793 = vmatprep.subr.mxu0 0.0
  %794 = vmatpush1.msra.mxu0 %v516
  %795 = vmatprep.subr.mxu0 0.0
  %796 = vmatpush1.msra.mxu0 %v517
  %797 = vmatprep.subr.mxu0 0.0
  %798 = vmatpush1.msra.mxu0 %v518
  %799 = vmatprep.subr.mxu0 0.0
  %800 = vmatpush1.msra.mxu0 %v519
  %801 = vmatprep.mubr.f32.mxu0 %v391
  %802 = vmatmul.mubr.f32.gmra.mrb[0].mxu0 %v390
  %v803 = vpop.f32.mrb[0].mxu0
  %v804 = vadd.f32 %v734, %v803
  %v805 = vpop.f32.mrb[0].mxu0
  %806 = vdwg.mxu0
  %vm807 = vcmask 31744
  %808 = vst.msk [vmem:[%s5] sm:$0xff] %vm807, %v804
  // Predicated region
  $region22: #{tpu_custom_call.1} parent=0 // pred_check
    _
  $region23: #{tpu_custom_call.1} parent=0 // pred_check_branch
    %810 = sbr.rel (0) target = $region25
  $region24: #{tpu_custom_call.1} parent=0 // pred_region
    _
  $region25: #{tpu_custom_call.1} parent=0 // pred_fallthru
    _
  // Predicated region
  $region26: #{tpu_custom_call.1} parent=0 // pred_check
    _
  $region27: #{tpu_custom_call.1} parent=0 // pred_check_branch
    %812 = sbr.rel (0) target = $region29
  $region28: #{tpu_custom_call.1} parent=0 // pred_region
    _
  $region29: #{tpu_custom_call.1} parent=0 // pred_fallthru
    _

</llo_original>
